<compile_context>
chip_gen: v6e
topology: v6e:2x2x1
jax: 0.10.0
libtpu: 0.0.40
codegen_flags: <defaults>
</compile_context>

<pallas_src>
import jax
import jax.numpy as jnp
from jax.experimental import pallas as pl
from jax.experimental.pallas import tpu as pltpu


# ----------------------------------------------------------------------------
# helpers
# ----------------------------------------------------------------------------
def _round_up(v, m):
    return ((v + m - 1) // m) * m


def _sublane_align(*dtypes):
    """Sublane alignment (rows per 32-bit sublane group) for the widest packing."""
    packing = 1
    for dt in dtypes:
        packing = max(packing, max(1, 4 // jnp.dtype(dt).itemsize))
    return 8 * packing


def _padded_block_bytes(shape, dtype):
    """VMEM footprint of one buffer of a block, including (sublane, lane) padding."""
    itemsize = jnp.dtype(dtype).itemsize
    packing = max(1, 4 // itemsize)
    dims = list(shape)
    dims[-1] = _round_up(dims[-1], 128)
    if len(dims) >= 2:
        dims[-2] = _round_up(dims[-2], 8 * packing)
    size = itemsize
    for d in dims:
        size *= d
    return size


def _vmem_capacity_bytes():
    try:
        return int(pltpu.get_tpu_info().vmem_capacity_bytes)
    except Exception:
        # Conservative fallback: v7x has the smallest per-TC VMEM (64 MiB).
        return 64 * 1024 * 1024


def _pick_tile(dim, target, align):
    """Largest multiple of `align` that divides `dim` and is <= max(target, align).
    `dim` must itself be a multiple of `align`, so this is always bounded."""
    target = max(align, (target // align) * align)
    if dim <= target:
        return dim
    t = target
    while t >= align:
        if dim % t == 0:
            return t
        t -= align
    return align  # unreachable when dim % align == 0


# ----------------------------------------------------------------------------
# kernel
# ----------------------------------------------------------------------------
def _make_kernel(tc, inv_hw, use_scratch, weight_resident):
    def kernel(x_ref, w_ref, b_ref, o_ref, *scratch):
        # x_ref: (TN, TC, HW)            w_ref: (C_pad, OUT_pad) resident
        # b_ref: (1, OUT_pad)                    or (TC, OUT_pad) streamed
        # o_ref: (TN, OUT_pad)           scratch[0]: (TN, OUT_pad) f32 (optional)
        k = pl.program_id(1)
        acc_ref = scratch[0] if use_scratch else o_ref

        @pl.when(k == 0)
        def _init():
            acc_ref[...] = jnp.zeros_like(acc_ref)

        # Global average pool over the spatial (lane) axis: f32 sum + cheap VPU
        # scale by 1/(H*W).  No blanket upcast of the block -> bf16 inputs stay
        # packed on the load path.
        pooled = jnp.sum(x_ref[...], axis=-1, dtype=jnp.float32) * inv_hw  # (TN, TC)

        if weight_resident:
            start = pl.multiple_of(k * tc, tc)
            w = w_ref[pl.ds(start, tc), :]                                 # (TC, OUT_pad)
        else:
            w = w_ref[...]

        # Partial Linear over this channel tile on the MXU (f32 accumulation).
        acc_ref[...] += jnp.dot(pooled.astype(w.dtype), w,
                                preferred_element_type=jnp.float32
                                ).astype(acc_ref.dtype)

        @pl.when(k == pl.num_programs(1) - 1)
        def _finalize():
            # Dropout(p) in eval mode is identity; bias is added exactly once.
            y = acc_ref[...].astype(jnp.float32) + b_ref[...].astype(jnp.float32)
            o_ref[...] = y.astype(o_ref.dtype)

    return kernel


# ----------------------------------------------------------------------------
# wrapper
# ----------------------------------------------------------------------------
def googlenet_classifier(x, weight, bias, out_channels):
    """
    x:      (N, C, H, W)        (NCHW, matching PyTorch)
    weight: (out_channels, C)   (PyTorch Linear weight layout)
    bias:   (out_channels,)
    """
    if out_channels <= 0:
        return x

    n, c, h, w = x.shape
    hw = h * w
    x_flat = x.reshape(n, c, hw)                           # cheap glue reshape

    out_dtype = x.dtype
    x_itemsize = jnp.dtype(x.dtype).itemsize
    w_itemsize = jnp.dtype(weight.dtype).itemsize

    # Lane-dense output width (clean MXU N dim + unmasked vst stores).
    out_pad = _round_up(out_channels, 128)

    # dtype-aware sublane alignments.
    align_c = _sublane_align(x.dtype, weight.dtype)        # x/weight channel dim
    align_n = _sublane_align(out_dtype)                    # output/acc batch dim

    # ---------------- batch tiling (parallel axis) ----------------
    if n <= align_n:
        tn, n_pad = n, n
    else:
        n_pad = _round_up(n, align_n)
        tn_target = 128
        if n >= 16:
            # >= 2 batch blocks so v7x's two TensorCores both get work.
            tn_target = min(tn_target,
                            max(align_n, (n_pad // 2) // align_n * align_n))
        tn = _pick_tile(n_pad, tn_target, align_n)

    # ---------------- VMEM budget (layout-aware) ----------------
    capacity = _vmem_capacity_bytes()
    budget = capacity * 3 // 4                     # ~48 MiB on v7x, ~96 MiB v5e/v6e

    use_scratch = jnp.dtype(out_dtype) != jnp.dtype(jnp.float32)

    b_block = _padded_block_bytes((1, out_pad), bias.dtype)
    o_block = _padded_block_bytes((tn, out_pad), out_dtype)
    acc_block = _padded_block_bytes((tn, out_pad), jnp.float32) if use_scratch else 0

    # Resident-weight footprint estimate (2x to stay conservative on buffering).
    w_full = 2 * _padded_block_bytes((_round_up(c, align_c), out_pad), weight.dtype)
    weight_resident = w_full <= min(budget // 3, 16 * 1024 * 1024)

    fixed = 2 * b_block + 2 * o_block + acc_block + (w_full if weight_resident else 0)
    avail = max(0, budget - fixed)

    # Per-channel-row cost of the double-buffered x stream (+ streamed weight).
    per_tc = 2 * tn * _round_up(hw, 128) * x_itemsize
    if not weight_resident:
        per_tc += 2 * out_pad * w_itemsize

    tc_budget = (avail // per_tc) // align_c * align_c
    tc_budget = max(align_c, min(tc_budget, 1024))
    tc = min(tc_budget, _round_up(c, align_c))
    c_pad = _round_up(c, tc)

    # ---------------- zero-pad operands so tiles divide exactly ----------------
    if n_pad != n or c_pad != c:
        x_flat = jnp.pad(x_flat, ((0, n_pad - n), (0, c_pad - c), (0, 0)))
    w_t = jnp.pad(weight.T, ((0, c_pad - c), (0, out_pad - out_channels)))
    b2 = jnp.pad(bias.reshape(1, out_channels),
                 ((0, 0), (0, out_pad - out_channels)))

    grid = (n_pad // tn, c_pad // tc)

    # ---------------- explicit per-generation VMEM limit ----------------
    x_block = _padded_block_bytes((tn, tc, hw), x.dtype)
    w_block = _padded_block_bytes(((c_pad if weight_resident else tc), out_pad),
                                  weight.dtype)
    footprint = 2 * x_block + 2 * w_block + 2 * b_block + 2 * o_block + acc_block
    vmem_limit = min(capacity * 7 // 8,
                     max(footprint + 8 * 1024 * 1024, 32 * 1024 * 1024))

    # ---------------- specs ----------------
    if weight_resident:
        w_spec = pl.BlockSpec((c_pad, out_pad), lambda i, k: (0, 0))
    else:
        w_spec = pl.BlockSpec((tc, out_pad), lambda i, k: (k, 0))

    in_specs = [
        pl.BlockSpec((tn, tc, hw), lambda i, k: (i, k, 0)),
        w_spec,
        pl.BlockSpec((1, out_pad), lambda i, k: (0, 0)),
    ]
    scratch_shapes = ([pltpu.VMEM((tn, out_pad), jnp.float32)]
                      if use_scratch else [])

    kernel = _make_kernel(tc, 1.0 / hw, use_scratch, weight_resident)

    out = pl.pallas_call(
        kernel,
        out_shape=jax.ShapeDtypeStruct((n_pad, out_pad), out_dtype),
        grid_spec=pltpu.PrefetchScalarGridSpec(
            num_scalar_prefetch=0,
            grid=grid,
            in_specs=in_specs,
            out_specs=pl.BlockSpec((tn, out_pad), lambda i, k: (i, 0)),
            scratch_shapes=scratch_shapes,
        ),
        compiler_params=pltpu.CompilerParams(
            dimension_semantics=("parallel", "arbitrary"),
            vmem_limit_bytes=int(vmem_limit)),
    )(x_flat, w_t, b2)

    return out[:n, :out_channels]


# ----------------------------------------------------------------------------
# reference + test
# ----------------------------------------------------------------------------
def reference(x, weight, bias, out_channels):
    if out_channels <= 0:
        return x
    pooled = jnp.mean(x, axis=(2, 3))                      # (N, C)
    return pooled @ weight.T + bias                        # (N, OUT)


if __name__ == "__main__":
    key = jax.random.PRNGKey(0)
    kx, kw, kb = jax.random.split(key, 3)

    N, C, H, W = 2, 4, 16, 16
    OUT = 8

    x = jax.random.normal(kx, (N, C, H, W), dtype=jnp.float32)
    # Deterministic, PyTorch-Linear-like init: U(-1/sqrt(C), 1/sqrt(C))
    bound = 1.0 / jnp.sqrt(jnp.float32(C))
    weight = jax.random.uniform(kw, (OUT, C), minval=-bound, maxval=bound,
                                dtype=jnp.float32)
    bias = jax.random.uniform(kb, (OUT,), minval=-bound, maxval=bound,
                              dtype=jnp.float32)

    y = googlenet_classifier(x, weight, bias, OUT)
    y = jax.block_until_ready(y)

    y_ref = reference(x, weight, bias, OUT)
    assert y.shape == (N, OUT)
    assert jnp.allclose(y, y_ref, atol=1e-5, rtol=1e-5), "mismatch vs reference"

    print("KERNEL_OK")
</pallas_src>

<mosaic_0001>
module attributes {stable_mosaic.version = 11 : i64} {
  func.func @kernel(%arg0: i32, %arg1: i32, %arg2: memref<2x8x256xf32, #tpu.memory_space<vmem>>, %arg3: memref<8x128xf32, #tpu.memory_space<vmem>>, %arg4: memref<1x128xf32, #tpu.memory_space<vmem>>, %arg5: memref<2x128xf32, #tpu.memory_space<vmem>>) attributes {dimension_semantics = [#tpu.dimension_semantics<parallel>, #tpu.dimension_semantics<arbitrary>], iteration_bounds = array<i64: 1, 1>, scalar_prefetch = 0 : i64, scratch_operands = 0 : i64, tpu.core_type = #tpu.core_type<tc>, window_params = [{transform_indices = @transform_0, window_bounds = array<i64: 2, 8, 256>}, {pipeline_mode = #tpu.pipeline_mode<synchronous>, transform_indices = @transform_1, window_bounds = array<i64: 8, 128>}, {pipeline_mode = #tpu.pipeline_mode<synchronous>, transform_indices = @transform_2, window_bounds = array<i64: 1, 128>}, {transform_indices = @transform_3, window_bounds = array<i64: 2, 128>}]} {
    %c0_i32 = arith.constant 0 : i32
    %0 = arith.cmpi eq, %arg1, %c0_i32 : i32
    %1 = arith.extui %0 : i1 to i32
    %c0_i32_0 = arith.constant 0 : i32
    %2 = arith.cmpi ne, %1, %c0_i32_0 : i32
    scf.if %2 {
      %cst_12 = arith.constant 0.000000e+00 : f32
      %18 = vector.broadcast %cst_12 : f32 to vector<2x128xf32>
      %c0_13 = arith.constant 0 : index
      %c0_14 = arith.constant 0 : index
      %19 = vector.load %arg5[%c0_13, %c0_14] : memref<2x128xf32, #tpu.memory_space<vmem>>, vector<2x128xf32>
      tpu.vector_store %arg5[%c0_13, %c0_14], %18 {strides = array<i32>} : memref<2x128xf32, #tpu.memory_space<vmem>>, vector<2x128xf32>,
    } else {
    }
    %c0 = arith.constant 0 : index
    %c0_1 = arith.constant 0 : index
    %c0_2 = arith.constant 0 : index
    %3 = vector.load %arg2[%c0, %c0_1, %c0_2] : memref<2x8x256xf32, #tpu.memory_space<vmem>>, vector<2x8x256xf32>
    %cst = arith.constant dense<0.000000e+00> : vector<2x8xf32>
    %4 = vector.multi_reduction <add>, %3, %cst [2] : vector<2x8x256xf32> to vector<2x8xf32>
    %cst_3 = arith.constant 3.906250e-03 : f32
    %5 = vector.broadcast %cst_3 : f32 to vector<2x8xf32>
    %6 = arith.mulf %4, %5 : vector<2x8xf32>
    %c8_i32 = arith.constant 8 : i32
    %7 = arith.muli %arg1, %c8_i32 : i32
    %8 = tpu.assume_multiple %7, 8 : i32
    %9 = arith.index_cast %8 : i32 to index
    %c0_4 = arith.constant 0 : index
    %10 = vector.load %arg3[%9, %c0_4] : memref<8x128xf32, #tpu.memory_space<vmem>>, vector<8x128xf32>
    %c0_5 = arith.constant 0 : index
    %c0_6 = arith.constant 0 : index
    %11 = vector.load %arg5[%c0_5, %c0_6] : memref<2x128xf32, #tpu.memory_space<vmem>>, vector<2x128xf32>
    %cst_7 = arith.constant dense<0.000000e+00> : vector<2x128xf32>
    %12 = tpu.matmul %6, %10, %cst_7 {dimension_numbers = #tpu.dot_dimension_numbers<[1], [0], [0], [1], [0, 0, 1, 1], [], []>} : vector<2x8xf32>, vector<8x128xf32>, vector<2x128xf32> -> vector<2x128xf32>
    %13 = arith.addf %11, %12 : vector<2x128xf32>
    %c0_8 = arith.constant 0 : index
    %c0_9 = arith.constant 0 : index
    %14 = vector.load %arg5[%c0_8, %c0_9] : memref<2x128xf32, #tpu.memory_space<vmem>>, vector<2x128xf32>
    tpu.vector_store %arg5[%c0_8, %c0_9], %13 {strides = array<i32>} : memref<2x128xf32, #tpu.memory_space<vmem>>, vector<2x128xf32>,
    %c0_i32_10 = arith.constant 0 : i32
    %15 = arith.cmpi eq, %arg1, %c0_i32_10 : i32
    %16 = arith.extui %15 : i1 to i32
    %c0_i32_11 = arith.constant 0 : i32
    %17 = arith.cmpi ne, %16, %c0_i32_11 : i32
    scf.if %17 {
      %c0_12 = arith.constant 0 : index
      %c0_13 = arith.constant 0 : index
      %18 = vector.load %arg5[%c0_12, %c0_13] : memref<2x128xf32, #tpu.memory_space<vmem>>, vector<2x128xf32>
      %c0_14 = arith.constant 0 : index
      %c0_15 = arith.constant 0 : index
      %19 = vector.load %arg4[%c0_14, %c0_15] : memref<1x128xf32, #tpu.memory_space<vmem>>, vector<1x128xf32>
      %20 = vector.broadcast %19 : vector<1x128xf32> to vector<2x128xf32>
      %21 = arith.addf %18, %20 : vector<2x128xf32>
      %c0_16 = arith.constant 0 : index
      %c0_17 = arith.constant 0 : index
      %22 = vector.load %arg5[%c0_16, %c0_17] : memref<2x128xf32, #tpu.memory_space<vmem>>, vector<2x128xf32>
      tpu.vector_store %arg5[%c0_16, %c0_17], %21 {strides = array<i32>} : memref<2x128xf32, #tpu.memory_space<vmem>>, vector<2x128xf32>,
    } else {
    }
    return
  }
  func.func @transform_0(%arg0: i32, %arg1: i32) -> (i32, i32, i32) {
    %c0_i32 = arith.constant 0 : i32
    %c0_i32_0 = arith.constant 0 : i32
    return %arg0, %arg1, %c0_i32 : i32, i32, i32
  }
  func.func @transform_1(%arg0: i32, %arg1: i32) -> (i32, i32) {
    %c0_i32 = arith.constant 0 : i32
    %c0_i32_0 = arith.constant 0 : i32
    %c0_i32_1 = arith.constant 0 : i32
    return %c0_i32, %c0_i32_0 : i32, i32
  }
  func.func @transform_2(%arg0: i32, %arg1: i32) -> (i32, i32) {
    %c0_i32 = arith.constant 0 : i32
    %c0_i32_0 = arith.constant 0 : i32
    %c0_i32_1 = arith.constant 0 : i32
    return %c0_i32, %c0_i32_0 : i32, i32
  }
  func.func @transform_3(%arg0: i32, %arg1: i32) -> (i32, i32) {
    %c0_i32 = arith.constant 0 : i32
    %c0_i32_0 = arith.constant 0 : i32
    return %arg0, %c0_i32 : i32, i32
  }
}

</mosaic_0001>

<llo_original>
// kernel: tpu_custom_call.1
$region0: #{tpu_custom_call.1}
  #allocation0 [shape = 'u32[]', space=smem, size = 0x4, offset = 0x4, fixed_abs, tag = 'smem constant byte address 0x4 - core index']
  #allocation1 [shape = 'u32[144,128]{1,0:T(1,128)}', space=vmem, size = 0x12000, scoped, tag = 'internal scratch']
  %s0 = inlined_call_operand.hbm [shape: f32[2,8,256], index: 0, kind: input, shape index: {}]
  %s1 = inlined_call_operand.hbm [shape: f32[8,128], index: 1, kind: input, shape index: {}]
  %s2 = inlined_call_operand.vmem [shape: f32[1,128], index: 2, kind: input, shape index: {}]
  %s3 = inlined_call_operand.hbm [shape: f32[2,128], index: 3, kind: output, shape index: {}]
  %s4 = sld [smem:[#allocation0]]
  $region38: #{tpu_custom_call.1} parent=0
    _
  %s6 = ssub.s32 1, %s4
  %s7 = scalar_select 0, %s6, %s4
  $region1: #{tpu_custom_call.1} parent=0
    #allocation2 [shape = 'u8[16384]{0}', space=vmem, size = 0x4000, scoped, tag = 'input window, operand 0, single buffered']
    #allocation3 [shape = 's32[1]{0}', space=sflag, size = 0x4, scoped, tag = 'scoped memory for tpu_custom_call.1']
    #allocation4 [shape = 's32[1]{0}', space=sflag, size = 0x4, scoped, tag = 'scoped memory for tpu_custom_call.1']
    #allocation5 [shape = 'u8[4096]{0}', space=vmem, size = 0x1000, scoped, tag = 'input window, operand 1, single buffered']
    #allocation6 [shape = 's32[1]{0}', space=sflag, size = 0x4, scoped, tag = 'scoped memory for tpu_custom_call.1']
    #allocation7 [shape = 'u8[1024]{0}', space=vmem, size = 0x400, scoped, tag = 'output window, operand 0, single buffered']
    %8 = vsyncpa [#allocation3], 0
    %9 = vsyncpa [#allocation6], 0
    %10 = vsyncpa [#allocation4], 0
    // Predicated region
    $region2: #{tpu_custom_call.1} parent=1 // pred_check
      _
    $region3: #{tpu_custom_call.1} parent=1 // pred_check_branch
      %12 = sbr.rel (0) target = $region5
    $region4: #{tpu_custom_call.1} parent=1 // pred_region
      %s14 = ssub.s32 512, 512
      %15 = vsyncadd [#allocation3], %s14
      %s16 = sshll.u32 [#allocation2], 4
      %s17 = int_to_ptr.vmem [resolvable:$true] %s16
      %22 = dma.hbm_to_vmem [thread:$0]  %s0, 512, %s17, [#allocation3], 256, 256, 16
    $region5: #{tpu_custom_call.1} parent=1 // pred_fallthru
      _
    // Predicated region
    $region6: #{tpu_custom_call.1} parent=1 // pred_check
      _
    $region7: #{tpu_custom_call.1} parent=1 // pred_check_branch
      %24 = sbr.rel (0) target = $region9
    $region8: #{tpu_custom_call.1} parent=1 // pred_region
      %s26 = ssub.s32 128, 128
      %27 = vsyncadd [#allocation6], %s26
      %s29 = sshll.u32 [#allocation5], 4
      %s30 = int_to_ptr.vmem [resolvable:$true] %s29
      %32 = dma.hbm_to_vmem [thread:$0]  %s1, 128, %s30, [#allocation6]
    $region9: #{tpu_custom_call.1} parent=1 // pred_fallthru
      _
    // Predicated region
    $region10: #{tpu_custom_call.1} parent=1 // pred_check
      _
    $region11: #{tpu_custom_call.1} parent=1 // pred_check_branch
      %34 = sbr.rel (0) target = $region13
    $region12: #{tpu_custom_call.1} parent=1 // pred_region
      _
    $region13: #{tpu_custom_call.1} parent=1 // pred_fallthru
      _
    // Predicated region
    $region14: #{tpu_custom_call.1} parent=1 // pred_check
      _
    $region15: #{tpu_custom_call.1} parent=1 // pred_check_branch
      %36 = sbr.rel (0) target = $region17
    $region16: #{tpu_custom_call.1} parent=1 // pred_region
      %37 = dma.done [#allocation3], 512
    $region17: #{tpu_custom_call.1} parent=1 // pred_fallthru
      _
    // Predicated region
    $region18: #{tpu_custom_call.1} parent=1 // pred_check
      _
    $region19: #{tpu_custom_call.1} parent=1 // pred_check_branch
      %39 = sbr.rel (0) target = $region21
    $region20: #{tpu_custom_call.1} parent=1 // pred_region
      %40 = dma.done [#allocation6], 128
    $region21: #{tpu_custom_call.1} parent=1 // pred_fallthru
      _
    %p41 = scmp.eq.s32.totalorder 0, 0
    // Predicated region
    $region22: #{tpu_custom_call.1} parent=1 // pred_check
      %p42 = pneg %p41
    $region23: #{tpu_custom_call.1} parent=1 // pred_check_branch
      %44 = sbr.rel (%p42) target = $region25
    $region24: #{tpu_custom_call.1} parent=1 // pred_region
      %45 = vst [vmem:[#allocation7] sm:$0x3] 0.0
    $region25: #{tpu_custom_call.1} parent=1 // pred_fallthru
      _
    %v46 = vld [vmem:[#allocation2] sm:$0xff]
    %v47 = vld [vmem:[#allocation2 + $0x8] sm:$0xff]
    %v48 = vld [vmem:[#allocation2 + $0x10] sm:$0xff]
    %v49 = vld [vmem:[#allocation2 + $0x18] sm:$0xff]
    %v50 = vadd.f32 %v46, %v47
    %51 = vadd.xlane.f32.xlu0 %v50
    %v52 = vpop.xlane.xlu0 %51
    %v53 = vadd.f32 %v48, %v49
    %54 = vadd.xlane.f32.xlu0 %v53
    %v55 = vpop.xlane.xlu0 %54
    %v56 = vmul.f32 %v52, 0.00390625
    %v57 = vmul.f32 %v55, 0.00390625
    %s58 = smul.u32 0, 8
    %s59 = scalar_lea.vmem [#allocation5], %s58
    %v60 = vld [vmem:[%s59] sm:$0xff]
    %v61 = vld [vmem:[#allocation7] sm:$0x3]
    %v64 = vlaneseq
    %v65 = vand.u32 %v64, 127
    %v66 = vlaneseq
    %v67 = vshrl.u32 %v66, 7
    %v68 = vsub.s32 %v65, %v67
    %v69 = vrot.slane %v56, %v68
    %v70 = vlaneseq
    %v71 = vshrl.u32 %v70, 7
    %v72 = vsub.s32 %v65, %v71
    %v73 = vrot.slane %v57, %v72
    %vm74 = vcmask 1041409
    %v75 = vsel %vm74, %v73, %v69
    %vm76 = vcmask 64512
    %v77 = vsel %vm76, %v75, 0
    %79 = vmatprep.subr.mxu0 0.0
    %80 = vmatpush1.msra.mxu0 0.0
    %81 = vmatprep.subr.mxu0 0.0
    %82 = vmatpush1.msra.mxu0 0.0
    %83 = vmatprep.subr.mxu0 0.0
    %84 = vmatpush1.msra.mxu0 0.0
    %85 = vmatprep.subr.mxu0 0.0
    %86 = vmatpush1.msra.mxu0 0.0
    %87 = vmatprep.subr.mxu0 0.0
    %88 = vmatpush1.msra.mxu0 0.0
    %89 = vmatprep.subr.mxu0 0.0
    %90 = vmatpush1.msra.mxu0 0.0
    %91 = vmatprep.subr.mxu0 0.0
    %92 = vmatpush1.msra.mxu0 0.0
    %93 = vmatprep.subr.mxu0 0.0
    %94 = vmatpush1.msra.mxu0 0.0
    %95 = vmatprep.subr.mxu0 0.0
    %96 = vmatpush1.msra.mxu0 0.0
    %97 = vmatprep.subr.mxu0 0.0
    %98 = vmatpush1.msra.mxu0 0.0
    %99 = vmatprep.subr.mxu0 0.0
    %100 = vmatpush1.msra.mxu0 0.0
    %101 = vmatprep.subr.mxu0 0.0
    %102 = vmatpush1.msra.mxu0 0.0
    %103 = vmatprep.subr.mxu0 0.0
    %104 = vmatpush1.msra.mxu0 0.0
    %105 = vmatprep.subr.mxu0 0.0
    %106 = vmatpush1.msra.mxu0 0.0
    %107 = vmatprep.subr.mxu0 0.0
    %108 = vmatpush1.msra.mxu0 0.0
    %109 = vmatprep.subr.mxu0 0.0
    %110 = vmatpush1.msra.mxu0 %v60
    %111 = vmatprep.subr.mxu0 0.0
    %112 = vmatpush2.msra.mxu0 0.0
    %113 = vmatprep.subr.mxu0 0.0
    %114 = vmatpush2.msra.mxu0 0.0
    %115 = vmatprep.subr.mxu0 0.0
    %116 = vmatpush2.msra.mxu0 0.0
    %117 = vmatprep.subr.mxu0 0.0
    %118 = vmatpush2.msra.mxu0 0.0
    %119 = vmatprep.subr.mxu0 0.0
    %120 = vmatpush2.msra.mxu0 0.0
    %121 = vmatprep.subr.mxu0 0.0
    %122 = vmatpush2.msra.mxu0 0.0
    %123 = vmatprep.subr.mxu0 0.0
    %124 = vmatpush2.msra.mxu0 0.0
    %125 = vmatprep.subr.mxu0 0.0
    %126 = vmatpush2.msra.mxu0 0.0
    %127 = vmatprep.subr.mxu0 0.0
    %128 = vmatpush2.msra.mxu0 0.0
    %129 = vmatprep.subr.mxu0 0.0
    %130 = vmatpush2.msra.mxu0 0.0
    %131 = vmatprep.subr.mxu0 0.0
    %132 = vmatpush2.msra.mxu0 0.0
    %133 = vmatprep.subr.mxu0 0.0
    %134 = vmatpush2.msra.mxu0 0.0
    %135 = vmatprep.subr.mxu0 0.0
    %136 = vmatpush2.msra.mxu0 0.0
    %137 = vmatprep.subr.mxu0 0.0
    %138 = vmatpush2.msra.mxu0 0.0
    %139 = vmatprep.subr.mxu0 0.0
    %140 = vmatpush2.msra.mxu0 0.0
    %141 = vmatprep.subr.mxu0 0.0
    %142 = vmatpush2.msra.mxu0 0.0
    %143 = vmatprep.mubr.f32.mxu0 0.0
    %144 = vmatmul.mubr.f32.gmra.mxu0 %v77
    %v145 = vpop.f32.mrf.mxu0
    %v146 = vadd.f32 0.0, %v145
    %v147 = vpop.f32.mrf.mxu0
    %148 = vdwg.mxu0
    %v149 = vadd.f32 %v61, %v146
    %150 = vst [vmem:[#allocation7] sm:$0x3] %v149
    // Predicated region
    $region26: #{tpu_custom_call.1} parent=1 // pred_check
      %p151 = pneg %p41
    $region27: #{tpu_custom_call.1} parent=1 // pred_check_branch
      %153 = sbr.rel (%p151) target = $region29
    $region28: #{tpu_custom_call.1} parent=1 // pred_region
      %v154 = vld [vmem:[#allocation7] sm:$0x3]
      %v155 = vld [vmem:[%s2] sm:$0x1]
      %v157 = vlaneseq
      %v158 = vshrl.u32 %v157, 7
      %v159 = vsub.s32 0, %v158
      %v160 = vrot.slane %v155, %v159
      %v162 = vadd.f32 %v154, %v160
      %163 = vst [vmem:[#allocation7] sm:$0x3] %v162
    $region29: #{tpu_custom_call.1} parent=1 // pred_fallthru
      _
    // Predicated region
    $region30: #{tpu_custom_call.1} parent=1 // pred_check
      _
    $region31: #{tpu_custom_call.1} parent=1 // pred_check_branch
      %165 = sbr.rel (0) target = $region33
    $region32: #{tpu_custom_call.1} parent=1 // pred_region
      %s167 = ssub.s32 32, 32
      %168 = vsyncadd [#allocation4], %s167
      %s170 = sshll.u32 [#allocation7], 4
      %s171 = int_to_ptr.vmem [resolvable:$true] %s170
      %173 = dma.vmem_to_hbm [thread:$0]  %s171, 32, %s3, [#allocation4]
    $region33: #{tpu_custom_call.1} parent=1 // pred_fallthru
      _
    // Predicated region
    $region34: #{tpu_custom_call.1} parent=1 // pred_check
      _
    $region35: #{tpu_custom_call.1} parent=1 // pred_check_branch
      %175 = sbr.rel (0) target = $region37
    $region36: #{tpu_custom_call.1} parent=1 // pred_region
      %176 = dma.done [#allocation4], 32
    $region37: #{tpu_custom_call.1} parent=1 // pred_fallthru
      _
    %177 = vsyncpa [#allocation3], 1
    %178 = vsyncpa [#allocation6], 1
    %179 = vsyncpa [#allocation4], 1

</llo_original>
